<compile_context>
chip_gen: v6e
topology: v6e:2x2x1
jax: 0.10.0
libtpu: 0.0.40
codegen_flags: <defaults>
</compile_context>

<pallas_src>
import jax
import jax.numpy as jnp
from jax.experimental import pallas as pl
from jax.experimental.pallas import tpu as pltpu

EPS = 1e-5


def add_norm_kernel(x1_ref, x2_ref, gamma_ref, beta_ref, o_ref):
    # x1/x2/o blocks: (TB, S, TE); gamma/beta blocks: (1, E), grid-resident.
    tb, s, te = o_ref.shape
    inv_n = jnp.float32(1.0 / s)

    # ---- Phase 1: fused one-pass statistics over the sequence (sublane) axis.
    x = x1_ref[...].astype(jnp.float32) + x2_ref[...].astype(jnp.float32)
    s1 = jnp.sum(x, axis=1, keepdims=True)           # (TB, 1, TE)
    s2 = jnp.sum(x * x, axis=1, keepdims=True)       # (TB, 1, TE)
    mean = s1 * inv_n
    # Biased variance via E[x^2] - mean^2, clamped at 0.
    # TODO(synk): cancellation-prone for poorly-centered inputs; switch to the
    # two-pass (x - mean)^2 form if such inputs matter more than peak VMEM.
    var = jnp.maximum(s2 * inv_n - mean * mean, 0.0)
    inv_std = jax.lax.rsqrt(var + EPS)

    # ---- Resident affine params: slice this step's channel window.
    e_start = pl.multiple_of(pl.program_id(1) * te, te)
    gamma = gamma_ref[:, pl.ds(e_start, te)].astype(jnp.float32)   # (1, TE)
    beta = beta_ref[:, pl.ds(e_start, te)].astype(jnp.float32)     # (1, TE)
    scale = gamma[:, None, :] * inv_std               # (TB, 1, TE)
    shift = beta[:, None, :] - mean * scale           # (TB, 1, TE)

    # ---- Phase 2: recompute the residual add (cheap VPU op) instead of
    # keeping the full (TB, S, TE) f32 temp live across the reductions.
    y = x1_ref[...].astype(jnp.float32) + x2_ref[...].astype(jnp.float32)
    o_ref[...] = (y * scale + shift).astype(o_ref.dtype)


def _vmem_budget():
    """(vmem_limit_bytes, per-block byte budget) derived from the chip."""
    try:
        cap = int(pltpu.get_tpu_info().vmem_capacity_bytes)
    except Exception:
        cap = 64 * 1024 * 1024  # conservative fallback (v7x per-TC VMEM)
    limit = (cap * 3) // 4      # ~0.75x physical -> headroom for compiler scratch
    return limit, limit // 2    # double-buffered blocks must fit half the limit


def _choose_tiles(B, S, E, itemsize, budget_bytes):
    """Pick (TB, TE) block dims for (B, S, E) under a per-block VMEM budget."""

    def block_bytes(tb, te):
        io = (2 * 2 + 2) * tb * S * te * itemsize   # 2 dbl-buffered inputs + dbl-buffered output
        temps = 2 * tb * S * te * 4                 # transient f32 temporaries
        return io + temps

    # --- embedding tile: prefer full-E (fully contiguous HBM DMA per row). ---
    te = E
    if block_bytes(1, E) > budget_bytes and E % 128 == 0:
        te = 128
        for cand in range(E - 128, 127, -128):
            if E % cand == 0 and block_bytes(1, cand) <= budget_bytes:
                te = cand
                break
    # TODO(synk): if E is not a multiple of 128 and the full-E block exceeds the
    # budget, pad E to the next 128-multiple in the wrapper (and slice the
    # output) instead of emitting non-lane-dense / oversized blocks.

    # --- batch folding: amortize per-step overhead for small per-block work,
    #     but keep enough grid steps for pipelining / both v7x TensorCores. ---
    unfolded_steps = B * (E // te)
    min_steps = 16 if unfolded_steps >= 16 else min(2, unfolded_steps)
    tb = 1
    for cand in range(B, 0, -1):
        if B % cand:
            continue
        if (B // cand) * (E // te) < min_steps:
            continue
        if block_bytes(cand, te) > budget_bytes:
            continue
        tb = cand
        break
    return tb, te


def add_and_normalize(x1, x2, gamma, beta, *, tb=None, te=None):
    B, S, E = x1.shape
    assert x2.shape == (B, S, E)
    # TODO(synk): assumes the full sequence S fits in VMEM per block; very long
    # sequences would need an extra "arbitrary" S grid axis with running
    # sum/sumsq accumulators (init/finalize via pl.when) plus a second pass.
    vmem_limit, budget = _vmem_budget()
    auto_tb, auto_te = _choose_tiles(B, S, E, x1.dtype.itemsize, budget)
    tb = auto_tb if tb is None else tb
    te = auto_te if te is None else te
    assert B % tb == 0, "batch tile must divide B"
    assert E % te == 0, "embedding tile must divide E"
    assert te == E or te % 128 == 0, "embedding tile must be lane-dense"

    gamma2d = gamma.reshape(1, E)
    beta2d = beta.reshape(1, E)

    return pl.pallas_call(
        add_norm_kernel,
        out_shape=jax.ShapeDtypeStruct((B, S, E), x1.dtype),
        grid_spec=pltpu.PrefetchScalarGridSpec(
            num_scalar_prefetch=0,
            grid=(B // tb, E // te),
            in_specs=[
                pl.BlockSpec((tb, S, te), lambda b, e: (b, 0, e)),
                pl.BlockSpec((tb, S, te), lambda b, e: (b, 0, e)),
                # Constant block index -> fetched once, resident for whole grid.
                pl.BlockSpec((1, E), lambda b, e: (0, 0)),
                pl.BlockSpec((1, E), lambda b, e: (0, 0)),
            ],
            out_specs=pl.BlockSpec((tb, S, te), lambda b, e: (b, 0, e)),
        ),
        compiler_params=pltpu.CompilerParams(
            dimension_semantics=("parallel", "parallel"),
            vmem_limit_bytes=vmem_limit,
        ),
    )(x1, x2, gamma2d, beta2d)


def reference(x1, x2, gamma, beta):
    x = (x1 + x2).astype(jnp.float32)
    mean = jnp.mean(x, axis=1, keepdims=True)               # over seq
    var = jnp.mean((x - mean) ** 2, axis=1, keepdims=True)  # biased
    xhat = (x - mean) * jax.lax.rsqrt(var + EPS)
    return xhat * gamma[None, None, :] + beta[None, None, :]


if __name__ == "__main__":
    key = jax.random.PRNGKey(0)
    k1, k2, k3, k4 = jax.random.split(key, 4)

    # Shapes implied by the module: (batch, seq, embedding_dim)
    B, S, E = 2, 8, 128
    x1 = jax.random.normal(k1, (B, S, E), dtype=jnp.float32)
    x2 = jax.random.normal(k2, (B, S, E), dtype=jnp.float32)
    # PyTorch default affine init is ones/zeros; use non-trivial deterministic
    # values to exercise the affine path.
    gamma = 1.0 + 0.1 * jax.random.normal(k3, (E,), dtype=jnp.float32)
    beta = 0.1 * jax.random.normal(k4, (E,), dtype=jnp.float32)

    out = jax.block_until_ready(add_and_normalize(x1, x2, gamma, beta))
    ref = reference(x1, x2, gamma, beta)
    assert out.shape == (B, S, E)
    assert jnp.allclose(out, ref, atol=1e-4, rtol=1e-4), "mismatch vs reference"

    # Exercise the E-tiled path (TE=128 over E=256) and the resident
    # gamma/beta slicing at a non-zero channel offset.
    B2, S2, E2 = 3, 16, 256
    k5, k6, k7, k8 = jax.random.split(jax.random.PRNGKey(1), 4)
    y1 = jax.random.normal(k5, (B2, S2, E2), dtype=jnp.float32)
    y2 = jax.random.normal(k6, (B2, S2, E2), dtype=jnp.float32)
    g2 = 1.0 + 0.1 * jax.random.normal(k7, (E2,), dtype=jnp.float32)
    b2 = 0.1 * jax.random.normal(k8, (E2,), dtype=jnp.float32)
    out2 = jax.block_until_ready(add_and_normalize(y1, y2, g2, b2, te=128))
    ref2 = reference(y1, y2, g2, b2)
    assert out2.shape == (B2, S2, E2)
    assert jnp.allclose(out2, ref2, atol=1e-4, rtol=1e-4), "mismatch vs reference (tiled E)"

    # Exercise the batch-folded path (auto heuristic picks TB=2 here).
    B3, S3, E3 = 4, 8, 128
    k9, k10, k11, k12 = jax.random.split(jax.random.PRNGKey(2), 4)
    z1 = jax.random.normal(k9, (B3, S3, E3), dtype=jnp.float32)
    z2 = jax.random.normal(k10, (B3, S3, E3), dtype=jnp.float32)
    g3 = 1.0 + 0.1 * jax.random.normal(k11, (E3,), dtype=jnp.float32)
    b3 = 0.1 * jax.random.normal(k12, (E3,), dtype=jnp.float32)
    out3 = jax.block_until_ready(add_and_normalize(z1, z2, g3, b3))
    ref3 = reference(z1, z2, g3, b3)
    assert out3.shape == (B3, S3, E3)
    assert jnp.allclose(out3, ref3, atol=1e-4, rtol=1e-4), "mismatch vs reference (folded B)"

    print("KERNEL_OK")
</pallas_src>

<mosaic_0001>
module attributes {stable_mosaic.version = 11 : i64} {
  func.func @add_norm_kernel(%arg0: i32, %arg1: i32, %arg2: memref<1x8x128xf32, #tpu.memory_space<vmem>>, %arg3: memref<1x8x128xf32, #tpu.memory_space<vmem>>, %arg4: memref<1x128xf32, #tpu.memory_space<vmem>>, %arg5: memref<1x128xf32, #tpu.memory_space<vmem>>, %arg6: memref<1x8x128xf32, #tpu.memory_space<vmem>>) attributes {dimension_semantics = [#tpu.dimension_semantics<parallel>, #tpu.dimension_semantics<parallel>], iteration_bounds = array<i64: 2, 1>, scalar_prefetch = 0 : i64, scratch_operands = 0 : i64, tpu.core_type = #tpu.core_type<tc>, window_params = [{transform_indices = @transform_0, window_bounds = array<i64: 1, 8, 128>}, {transform_indices = @transform_1, window_bounds = array<i64: 1, 8, 128>}, {pipeline_mode = #tpu.pipeline_mode<synchronous>, transform_indices = @transform_2, window_bounds = array<i64: 1, 128>}, {pipeline_mode = #tpu.pipeline_mode<synchronous>, transform_indices = @transform_3, window_bounds = array<i64: 1, 128>}, {transform_indices = @transform_4, window_bounds = array<i64: 1, 8, 128>}]} {
    %c0 = arith.constant 0 : index
    %c0_0 = arith.constant 0 : index
    %c0_1 = arith.constant 0 : index
    %0 = vector.load %arg2[%c0, %c0_0, %c0_1] : memref<1x8x128xf32, #tpu.memory_space<vmem>>, vector<1x8x128xf32>
    %c0_2 = arith.constant 0 : index
    %c0_3 = arith.constant 0 : index
    %c0_4 = arith.constant 0 : index
    %1 = vector.load %arg3[%c0_2, %c0_3, %c0_4] : memref<1x8x128xf32, #tpu.memory_space<vmem>>, vector<1x8x128xf32>
    %2 = arith.addf %0, %1 : vector<1x8x128xf32>
    %cst = arith.constant dense<0.000000e+00> : vector<1x128xf32>
    %3 = vector.multi_reduction <add>, %2, %cst [1] : vector<1x8x128xf32> to vector<1x128xf32>
    %4 = vector.shape_cast %3 : vector<1x128xf32> to vector<1x1x128xf32>
    %5 = arith.mulf %2, %2 : vector<1x8x128xf32>
    %cst_5 = arith.constant dense<0.000000e+00> : vector<1x128xf32>
    %6 = vector.multi_reduction <add>, %5, %cst_5 [1] : vector<1x8x128xf32> to vector<1x128xf32>
    %7 = vector.shape_cast %6 : vector<1x128xf32> to vector<1x1x128xf32>
    %cst_6 = arith.constant 1.250000e-01 : f32
    %8 = vector.broadcast %cst_6 : f32 to vector<1x1x128xf32>
    %9 = arith.mulf %4, %8 : vector<1x1x128xf32>
    %cst_7 = arith.constant 1.250000e-01 : f32
    %10 = vector.broadcast %cst_7 : f32 to vector<1x1x128xf32>
    %11 = arith.mulf %7, %10 : vector<1x1x128xf32>
    %12 = arith.mulf %9, %9 : vector<1x1x128xf32>
    %13 = arith.subf %11, %12 : vector<1x1x128xf32>
    %cst_8 = arith.constant 0.000000e+00 : f32
    %14 = vector.broadcast %cst_8 : f32 to vector<1x1x128xf32>
    %15 = arith.maximumf %13, %14 : vector<1x1x128xf32>
    %cst_9 = arith.constant 9.99999974E-6 : f32
    %16 = vector.broadcast %cst_9 : f32 to vector<1x1x128xf32>
    %17 = arith.addf %15, %16 : vector<1x1x128xf32>
    %18 = math.rsqrt %17 : vector<1x1x128xf32>
    %c128_i32 = arith.constant 128 : i32
    %19 = arith.muli %arg1, %c128_i32 : i32
    %20 = tpu.assume_multiple %19, 128 : i32
    %c0_10 = arith.constant 0 : index
    %21 = arith.index_cast %20 : i32 to index
    %22 = vector.load %arg4[%c0_10, %21] : memref<1x128xf32, #tpu.memory_space<vmem>>, vector<1x128xf32>
    %c0_11 = arith.constant 0 : index
    %23 = arith.index_cast %20 : i32 to index
    %24 = vector.load %arg5[%c0_11, %23] : memref<1x128xf32, #tpu.memory_space<vmem>>, vector<1x128xf32>
    %25 = vector.shape_cast %22 : vector<1x128xf32> to vector<1x1x128xf32>
    %26 = arith.mulf %25, %18 : vector<1x1x128xf32>
    %27 = vector.shape_cast %24 : vector<1x128xf32> to vector<1x1x128xf32>
    %28 = arith.mulf %9, %26 : vector<1x1x128xf32>
    %29 = arith.subf %27, %28 : vector<1x1x128xf32>
    %c0_12 = arith.constant 0 : index
    %c0_13 = arith.constant 0 : index
    %c0_14 = arith.constant 0 : index
    %30 = vector.load %arg2[%c0_12, %c0_13, %c0_14] : memref<1x8x128xf32, #tpu.memory_space<vmem>>, vector<1x8x128xf32>
    %c0_15 = arith.constant 0 : index
    %c0_16 = arith.constant 0 : index
    %c0_17 = arith.constant 0 : index
    %31 = vector.load %arg3[%c0_15, %c0_16, %c0_17] : memref<1x8x128xf32, #tpu.memory_space<vmem>>, vector<1x8x128xf32>
    %32 = arith.addf %30, %31 : vector<1x8x128xf32>
    %33 = vector.broadcast %26 : vector<1x1x128xf32> to vector<1x8x128xf32>
    %34 = arith.mulf %32, %33 : vector<1x8x128xf32>
    %35 = vector.broadcast %29 : vector<1x1x128xf32> to vector<1x8x128xf32>
    %36 = arith.addf %34, %35 : vector<1x8x128xf32>
    %c0_18 = arith.constant 0 : index
    %c0_19 = arith.constant 0 : index
    %c0_20 = arith.constant 0 : index
    %37 = vector.load %arg6[%c0_18, %c0_19, %c0_20] : memref<1x8x128xf32, #tpu.memory_space<vmem>>, vector<1x8x128xf32>
    tpu.vector_store %arg6[%c0_18, %c0_19, %c0_20], %36 {strides = array<i32>} : memref<1x8x128xf32, #tpu.memory_space<vmem>>, vector<1x8x128xf32>,
    return
  }
  func.func @transform_0(%arg0: i32, %arg1: i32) -> (i32, i32, i32) {
    %c0_i32 = arith.constant 0 : i32
    %c0_i32_0 = arith.constant 0 : i32
    return %arg0, %c0_i32, %arg1 : i32, i32, i32
  }
  func.func @transform_1(%arg0: i32, %arg1: i32) -> (i32, i32, i32) {
    %c0_i32 = arith.constant 0 : i32
    %c0_i32_0 = arith.constant 0 : i32
    return %arg0, %c0_i32, %arg1 : i32, i32, i32
  }
  func.func @transform_2(%arg0: i32, %arg1: i32) -> (i32, i32) {
    %c0_i32 = arith.constant 0 : i32
    %c0_i32_0 = arith.constant 0 : i32
    %c0_i32_1 = arith.constant 0 : i32
    return %c0_i32, %c0_i32_0 : i32, i32
  }
  func.func @transform_3(%arg0: i32, %arg1: i32) -> (i32, i32) {
    %c0_i32 = arith.constant 0 : i32
    %c0_i32_0 = arith.constant 0 : i32
    %c0_i32_1 = arith.constant 0 : i32
    return %c0_i32, %c0_i32_0 : i32, i32
  }
  func.func @transform_4(%arg0: i32, %arg1: i32) -> (i32, i32, i32) {
    %c0_i32 = arith.constant 0 : i32
    %c0_i32_0 = arith.constant 0 : i32
    return %arg0, %c0_i32, %arg1 : i32, i32, i32
  }
}

</mosaic_0001>

<llo_original>
// kernel: tpu_custom_call.1
$region0: #{tpu_custom_call.1}
  #allocation0 [shape = 'u32[]', space=smem, size = 0x4, offset = 0x4, fixed_abs, tag = 'smem constant byte address 0x4 - core index']
  #allocation1 [shape = 'u32[144,128]{1,0:T(1,128)}', space=vmem, size = 0x12000, scoped, tag = 'internal scratch']
  %s0 = inlined_call_operand.hbm [shape: f32[2,8,128], index: 0, kind: input, shape index: {}]
  %s1 = inlined_call_operand.hbm [shape: f32[2,8,128], index: 1, kind: input, shape index: {}]
  %s2 = inlined_call_operand.vmem [shape: f32[1,128], index: 2, kind: input, shape index: {}]
  %s3 = inlined_call_operand.vmem [shape: f32[1,128], index: 3, kind: input, shape index: {}]
  %s4 = inlined_call_operand.hbm [shape: f32[2,8,128], index: 4, kind: output, shape index: {}]
  %s5 = sld [smem:[#allocation0]]
  $region57: #{tpu_custom_call.1} parent=0
    _
  %s7 = ssub.s32 1, %s5
  %s8 = scalar_select 0, %s7, %s5
  $region1: #{tpu_custom_call.1} parent=0
    #allocation2 [shape = 'u8[8192]{0}', space=vmem, size = 0x2000, scoped, tag = 'input window, operand 0']
    #allocation3 [shape = 's32[2]{0}', space=sflag, size = 0x8, scoped, tag = 'scoped memory for tpu_custom_call.1']
    #allocation4 [shape = 's32[2]{0}', space=sflag, size = 0x8, scoped, tag = 'scoped memory for tpu_custom_call.1']
    #allocation5 [shape = 'u8[8192]{0}', space=vmem, size = 0x2000, scoped, tag = 'input window, operand 1']
    #allocation6 [shape = 's32[2]{0}', space=sflag, size = 0x8, scoped, tag = 'scoped memory for tpu_custom_call.1']
    #allocation7 [shape = 'u8[8192]{0}', space=vmem, size = 0x2000, scoped, tag = 'output window, operand 0']
    %9 = vsyncpa [#allocation3], 0
    %s10 = scalar_lea.sflag [#allocation3], 1
    %11 = vsyncpa %s10, 0
    %12 = vsyncpa [#allocation6], 0
    %s13 = scalar_lea.sflag [#allocation6], 1
    %14 = vsyncpa %s13, 0
    %15 = vsyncpa [#allocation4], 0
    %s16 = scalar_lea.sflag [#allocation4], 1
    %17 = vsyncpa %s16, 0
    loop: start=0, step=1, limit=4
    $region2: #{tpu_custom_call.1} parent=1 // loop_pre_header
      _
    $region3: #{tpu_custom_call.1} parent=1 // loop_header
      %s19 = sphi 0, %s23
      %p20 = scmp.ge.s32.totalorder %s19, 4
      %s26 = sphi 0, %s38
      %s27 = sphi 0, %s34
      %s28 = sphi 0, %s26
      %s29 = sphi 0, %s27
      %s30 = sphi 0, %s28
      %s31 = sphi 0, %s29
      %s43 = sphi 0, %s45
      %s46 = sphi 0, %s43
      %s47 = sphi 0, %s46
      %s63 = sphi 0, %s47
      %s71 = sphi 0, %s73
      %s74 = sphi 0, %s71
      %s75 = sphi 0, %s74
      %s91 = sphi 0, %s75
      %s95 = sphi 0, %s95
      %s97 = sphi 0, %s95
      %s98 = sphi 0, %s97
      %s112 = sphi 0, %s98
      %s116 = sphi 0, %s116
      %s118 = sphi 0, %s116
      %s119 = sphi 0, %s118
      %s133 = sphi 0, %s119
      %s141 = sphi 0, %s143
      %s144 = sphi 0, %s141
      %s145 = sphi 0, %s144
      %s161 = sphi 0, %s145
    $region4: #{tpu_custom_call.1} parent=1 // loop_header_branch
      %22 = sbr.rel (%p20) target = $region8
    $region5: #{tpu_custom_call.1} parent=1 // loop_body
      %s24 = ssub.s32 %s19, 1
      %s25 = ssub.s32 %s19, 2
      %s32 = sadd.s32 1, %s27
      %p33 = scmp.ge.s32.totalorder %s32, 1
      %s34 = scalar_select %p33, 0, %s32
      %s35 = sadd.s32 1, %s26
      %s36 = scalar_select %p33, %s35, %s26
      %p37 = scmp.ge.s32.totalorder %s36, 2
      %s38 = scalar_select %p37, 0, %s36
      %s39 = ssub.s32 %s26, %s38
      %s40 = ssub.s32 %s27, %s34
      %s41 = sor.u32 %s39, %s40
      %p42 = scmp.eq.s32.totalorder %s41, 0
      %s44 = sadd.s32 %s43, 1
      %s45 = scalar_select %p42, %s43, %s44
      %p48 = pneg %p42
      %p49 = scmp.eq.s32.totalorder %s19, 1
      %p50 = por %p48, %p49
      %p51 = scmp.ne.s32.totalorder %s43, %s46
      %p52 = scmp.eq.s32.totalorder %s19, 0
      %p53 = por %p51, %p52
      %p54 = scmp.ne.s32.totalorder %s43, %s46
      %p55 = scmp.eq.s32.totalorder %s24, 1
      %p56 = por %p54, %p55
      %p57 = scmp.ne.s32.totalorder %s46, %s47
      %p58 = scmp.eq.s32.totalorder %s24, 0
      %p59 = por %p57, %p58
      %p60 = scmp.ne.s32.totalorder %s46, %s47
      %p61 = scmp.eq.s32.totalorder %s25, 1
      %p62 = por %p60, %p61
      %p64 = scmp.ne.s32.totalorder %s47, %s63
      %p65 = scmp.eq.s32.totalorder %s25, 0
      %p66 = por %p64, %p65
      %s67 = ssub.s32 %s26, %s38
      %s68 = ssub.s32 %s27, %s34
      %s69 = sor.u32 %s67, %s68
      %p70 = scmp.eq.s32.totalorder %s69, 0
      %s72 = sadd.s32 %s71, 1
      %s73 = scalar_select %p70, %s71, %s72
      %p76 = pneg %p70
      %p77 = scmp.eq.s32.totalorder %s19, 1
      %p78 = por %p76, %p77
      %p79 = scmp.ne.s32.totalorder %s71, %s74
      %p80 = scmp.eq.s32.totalorder %s19, 0
      %p81 = por %p79, %p80
      %p82 = scmp.ne.s32.totalorder %s71, %s74
      %p83 = scmp.eq.s32.totalorder %s24, 1
      %p84 = por %p82, %p83
      %p85 = scmp.ne.s32.totalorder %s74, %s75
      %p86 = scmp.eq.s32.totalorder %s24, 0
      %p87 = por %p85, %p86
      %p88 = scmp.ne.s32.totalorder %s74, %s75
      %p89 = scmp.eq.s32.totalorder %s25, 1
      %p90 = por %p88, %p89
      %p92 = scmp.ne.s32.totalorder %s75, %s91
      %p93 = scmp.eq.s32.totalorder %s25, 0
      %p94 = por %p92, %p93
      %s96 = sadd.s32 %s95, 1
      %p99 = scmp.eq.s32.totalorder %s19, 1
      %p100 = scmp.ne.s32.totalorder %s95, %s97
      %p101 = scmp.eq.s32.totalorder %s19, 0
      %p102 = por %p100, %p101
      %p103 = scmp.ne.s32.totalorder %s95, %s97
      %p104 = scmp.eq.s32.totalorder %s24, 1
      %p105 = por %p103, %p104
      %p106 = scmp.ne.s32.totalorder %s97, %s98
      %p107 = scmp.eq.s32.totalorder %s24, 0
      %p108 = por %p106, %p107
      %p109 = scmp.ne.s32.totalorder %s97, %s98
      %p110 = scmp.eq.s32.totalorder %s25, 1
      %p111 = por %p109, %p110
      %p113 = scmp.ne.s32.totalorder %s98, %s112
      %p114 = scmp.eq.s32.totalorder %s25, 0
      %p115 = por %p113, %p114
      %s117 = sadd.s32 %s116, 1
      %p120 = scmp.eq.s32.totalorder %s19, 1
      %p121 = scmp.ne.s32.totalorder %s116, %s118
      %p122 = scmp.eq.s32.totalorder %s19, 0
      %p123 = por %p121, %p122
      %p124 = scmp.ne.s32.totalorder %s116, %s118
      %p125 = scmp.eq.s32.totalorder %s24, 1
      %p126 = por %p124, %p125
      %p127 = scmp.ne.s32.totalorder %s118, %s119
      %p128 = scmp.eq.s32.totalorder %s24, 0
      %p129 = por %p127, %p128
      %p130 = scmp.ne.s32.totalorder %s118, %s119
      %p131 = scmp.eq.s32.totalorder %s25, 1
      %p132 = por %p130, %p131
      %p134 = scmp.ne.s32.totalorder %s119, %s133
      %p135 = scmp.eq.s32.totalorder %s25, 0
      %p136 = por %p134, %p135
      %s137 = ssub.s32 %s26, %s38
      %s138 = ssub.s32 %s27, %s34
      %s139 = sor.u32 %s137, %s138
      %p140 = scmp.eq.s32.totalorder %s139, 0
      %s142 = sadd.s32 %s141, 1
      %s143 = scalar_select %p140, %s141, %s142
      %p146 = pneg %p140
      %p147 = scmp.eq.s32.totalorder %s19, 1
      %p148 = por %p146, %p147
      %p149 = scmp.ne.s32.totalorder %s141, %s144
      %p150 = scmp.eq.s32.totalorder %s19, 0
      %p151 = por %p149, %p150
      %p152 = scmp.ne.s32.totalorder %s141, %s144
      %p153 = scmp.eq.s32.totalorder %s24, 1
      %p154 = por %p152, %p153
      %p155 = scmp.ne.s32.totalorder %s144, %s145
      %p156 = scmp.eq.s32.totalorder %s24, 0
      %p157 = por %p155, %p156
      %p158 = scmp.ne.s32.totalorder %s144, %s145
      %p159 = scmp.eq.s32.totalorder %s25, 1
      %p160 = por %p158, %p159
      %p162 = scmp.ne.s32.totalorder %s145, %s161
      %p163 = scmp.eq.s32.totalorder %s25, 0
      %p164 = por %p162, %p163
      %p165 = scmp.le.s32.totalorder 1, %s19
      %p166 = scmp.lt.s32.totalorder %s19, 3
      %p167 = pnand %p165, %p166
      %p168 = pneg %p167
      // Predicated region
      $region9: #{tpu_custom_call.1} parent=5 // pred_check
        _
      $region10: #{tpu_custom_call.1} parent=5 // pred_check_branch
        %170 = sbr.rel (%p167) target = $region12
      $region11: #{tpu_custom_call.1} parent=5 // pred_region
        %s171 = ssub.s32 %s19, 1
        // Predicated region
        $region13: #{tpu_custom_call.1} parent=11 // pred_check
          %p172 = pneg %p108
        $region14: #{tpu_custom_call.1} parent=11 // pred_check_branch
          %174 = sbr.rel (%p172) target = $region16
        $region15: #{tpu_custom_call.1} parent=11 // pred_region
          _
        $region16: #{tpu_custom_call.1} parent=11 // pred_fallthru
          _
        // Predicated region
        $region17: #{tpu_custom_call.1} parent=11 // pred_check
          %p175 = pneg %p129
        $region18: #{tpu_custom_call.1} parent=11 // pred_check_branch
          %177 = sbr.rel (%p175) target = $region20
        $region19: #{tpu_custom_call.1} parent=11 // pred_region
          _
        $region20: #{tpu_custom_call.1} parent=11 // pred_fallthru
          _
      $region12: #{tpu_custom_call.1} parent=5 // pred_fallthru
        _
      %p178 = scmp.lt.s32.totalorder %s19, 2
      // Predicated region
      $region21: #{tpu_custom_call.1} parent=5 // pred_check
        %p179 = pneg %p178
      $region22: #{tpu_custom_call.1} parent=5 // pred_check_branch
        %181 = sbr.rel (%p179) target = $region24
      $region23: #{tpu_custom_call.1} parent=5 // pred_region
        // Predicated region
        $region25: #{tpu_custom_call.1} parent=23 // pred_check
          %p182 = pneg %p53
        $region26: #{tpu_custom_call.1} parent=23 // pred_check_branch
          %184 = sbr.rel (%p182) target = $region28
        $region27: #{tpu_custom_call.1} parent=23 // pred_region
          %s185 = sand.u32 %s43, 1
          %s186 = scalar_lea.sflag [#allocation3], %s185
          %s187 = sand.u32 %s43, 1
          %s188 = smul.addr %s187, 8
          %s189 = scalar_lea.vmem [#allocation2], %s188
          %s191 = ssub.s32 128, 128
          %192 = vsyncadd %s186, %s191
          %s193 = sadd.s32 %s27, %s26
          %s194 = smul.addr %s193, 128
          %s195 = scalar_lea.hbm %s0, %s194
          %s197 = sshll.u32 %s189, 4
          %s198 = int_to_ptr.vmem [resolvable:$true] %s197
          %200 = dma.hbm_to_vmem [thread:$0]  %s195, 128, %s198, %s186
        $region28: #{tpu_custom_call.1} parent=23 // pred_fallthru
          _
        // Predicated region
        $region29: #{tpu_custom_call.1} parent=23 // pred_check
          %p201 = pneg %p81
        $region30: #{tpu_custom_call.1} parent=23 // pred_check_branch
          %203 = sbr.rel (%p201) target = $region32
        $region31: #{tpu_custom_call.1} parent=23 // pred_region
          %s204 = sand.u32 %s71, 1
          %s205 = scalar_lea.sflag [#allocation6], %s204
          %s206 = sand.u32 %s71, 1
          %s207 = smul.addr %s206, 8
          %s208 = scalar_lea.vmem [#allocation5], %s207
          %s210 = ssub.s32 128, 128
          %211 = vsyncadd %s205, %s210
          %s212 = sadd.s32 %s27, %s26
          %s213 = smul.addr %s212, 128
          %s214 = scalar_lea.hbm %s1, %s213
          %s216 = sshll.u32 %s208, 4
          %s217 = int_to_ptr.vmem [resolvable:$true] %s216
          %219 = dma.hbm_to_vmem [thread:$0]  %s214, 128, %s217, %s205
        $region32: #{tpu_custom_call.1} parent=23 // pred_fallthru
          _
      $region24: #{tpu_custom_call.1} parent=5 // pred_fallthru
        _
      %p220 = scmp.le.s32.totalorder 1, %s19
      %p221 = scmp.lt.s32.totalorder %s19, 3
      %p222 = pnand %p220, %p221
      %p223 = pneg %p222
      // Predicated region
      $region33: #{tpu_custom_call.1} parent=5 // pred_check
        _
      $region34: #{tpu_custom_call.1} parent=5 // pred_check_branch
        %225 = sbr.rel (%p222) target = $region36
      $region35: #{tpu_custom_call.1} parent=5 // pred_region
        %s226 = ssub.s32 %s19, 1
        %s227 = sand.u32 %s46, 1
        %s228 = scalar_lea.sflag [#allocation3], %s227
        %s229 = sand.u32 %s46, 1
        %s230 = smul.addr %s229, 8
        %s231 = scalar_lea.vmem [#allocation2], %s230
        // Predicated region
        $region37: #{tpu_custom_call.1} parent=35 // pred_check
          %p232 = pneg %p59
        $region38: #{tpu_custom_call.1} parent=35 // pred_check_branch
          %234 = sbr.rel (%p232) target = $region40
        $region39: #{tpu_custom_call.1} parent=35 // pred_region
          %235 = dma.done %s228, 128
        $region40: #{tpu_custom_call.1} parent=35 // pred_fallthru
          _
        %s236 = sand.u32 %s74, 1
        %s237 = scalar_lea.sflag [#allocation6], %s236
        %s238 = sand.u32 %s74, 1
        %s239 = smul.addr %s238, 8
        %s240 = scalar_lea.vmem [#allocation5], %s239
        // Predicated region
        $region41: #{tpu_custom_call.1} parent=35 // pred_check
          %p241 = pneg %p87
        $region42: #{tpu_custom_call.1} parent=35 // pred_check_branch
          %243 = sbr.rel (%p241) target = $region44
        $region43: #{tpu_custom_call.1} parent=35 // pred_region
          %244 = dma.done %s237, 128
        $region44: #{tpu_custom_call.1} parent=35 // pred_fallthru
          _
        %s245 = sand.u32 %s46, 1
        %s246 = scalar_lea.sflag [#allocation3], %s245
        %s247 = sand.u32 %s46, 1
        %s248 = smul.addr %s247, 8
        %s249 = scalar_lea.vmem [#allocation2], %s248
        %p250 = pneg %p59
        %p251 = pneg %p56
        %s252 = sand.u32 %s74, 1
        %s253 = scalar_lea.sflag [#allocation6], %s252
        %s254 = sand.u32 %s74, 1
        %s255 = smul.addr %s254, 8
        %s256 = scalar_lea.vmem [#allocation5], %s255
        %p257 = pneg %p87
        %p258 = pneg %p84
        %p259 = pneg %p108
        %p260 = pneg %p105
        %p261 = pneg %p129
        %p262 = pneg %p126
        %p263 = pneg %p157
        %p264 = pneg %p154
        %s265 = sand.u32 %s144, 1
        %s266 = scalar_lea.sflag [#allocation4], %s265
        %s267 = sand.u32 %s144, 1
        %s268 = smul.addr %s267, 8
        %s269 = scalar_lea.vmem [#allocation7], %s268
        %v270 = vld [vmem:[%s231] sm:$0xff]
        %v271 = vld [vmem:[%s240] sm:$0xff]
        %v272 = vadd.f32 %v270, %v271
        %v273 = vrot.slane %v272, 4
        %v274 = vadd.f32 %v272, %v273
        %v275 = vrot.slane %v274, 2
        %v276 = vadd.f32 %v274, %v275
        %v277 = vrot.slane %v276, 1
        %v278 = vadd.f32 %v276, %v277
        %v279 = vmul.f32 %v272, %v272
        %v280 = vrot.slane %v279, 4
        %v281 = vadd.f32 %v279, %v280
        %v282 = vrot.slane %v281, 2
        %v283 = vadd.f32 %v281, %v282
        %v284 = vrot.slane %v283, 1
        %v285 = vadd.f32 %v283, %v284
        %v286 = vmul.f32 %v278, 0.125
        %v287 = vmul.f32 %v285, 0.125
        %v288 = vmul.f32 %v286, %v286
        %v289 = vsub.f32 %v287, %v288
        %v290 = vmax.f32 %v289, 0.0
        %v291 = vadd.f32 %v290, 1e-05
        %v292 = vrsqrt.pop %v291
        %s293 = smul.u32 %s29, 128
        %s294 = sshra.s32 %s293, 7
        %s295 = sand.u32 %s293, 127
        %s296 = scalar_lea.vmem %s2, %s294
        %v297 = vld [vmem:[%s296] sm:$0x1]
        %s298 = scalar_lea.vmem %s3, %s294
        %v299 = vld [vmem:[%s298] sm:$0x1]
        %v300 = vmul.f32 %v297, %v292
        %v301 = vmul.f32 %v286, %v300
        %v302 = vsub.f32 %v299, %v301
        %v304 = vlaneseq
        %v305 = vshrl.u32 %v304, 7
        %v306 = vsub.s32 0, %v305
        %v307 = vrot.slane %v300, %v306
        %v309 = vmul.f32 %v272, %v307
        %v311 = vlaneseq
        %v312 = vshrl.u32 %v311, 7
        %v313 = vsub.s32 0, %v312
        %v314 = vrot.slane %v302, %v313
        %v316 = vadd.f32 %v309, %v314
        %317 = vst [vmem:[%s269] sm:$0xff] %v316
        %s318 = sand.u32 %s144, 1
        %s319 = scalar_lea.sflag [#allocation4], %s318
        %s320 = sand.u32 %s144, 1
        %s321 = smul.addr %s320, 8
        %s322 = scalar_lea.vmem [#allocation7], %s321
        // Predicated region
        $region45: #{tpu_custom_call.1} parent=35 // pred_check
          %p323 = pneg %p154
        $region46: #{tpu_custom_call.1} parent=35 // pred_check_branch
          %325 = sbr.rel (%p323) target = $region48
        $region47: #{tpu_custom_call.1} parent=35 // pred_region
          %s327 = ssub.s32 128, 128
          %328 = vsyncadd %s319, %s327
          %s329 = sadd.s32 %s29, %s28
          %s330 = smul.addr %s329, 128
          %s331 = scalar_lea.hbm %s4, %s330
          %s333 = sshll.u32 %s322, 4
          %s334 = int_to_ptr.vmem [resolvable:$true] %s333
          %336 = dma.vmem_to_hbm [thread:$0]  %s334, 128, %s331, %s319
        $region48: #{tpu_custom_call.1} parent=35 // pred_fallthru
          _
      $region36: #{tpu_custom_call.1} parent=5 // pred_fallthru
        _
      %p337 = scmp.le.s32.totalorder 2, %s19
      // Predicated region
      $region49: #{tpu_custom_call.1} parent=5 // pred_check
        %p338 = pneg %p337
      $region50: #{tpu_custom_call.1} parent=5 // pred_check_branch
        %340 = sbr.rel (%p338) target = $region52
      $region51: #{tpu_custom_call.1} parent=5 // pred_region
        %s341 = ssub.s32 %s19, 2
        // Predicated region
        $region53: #{tpu_custom_call.1} parent=51 // pred_check
          %p342 = pneg %p160
        $region54: #{tpu_custom_call.1} parent=51 // pred_check_branch
          %344 = sbr.rel (%p342) target = $region56
        $region55: #{tpu_custom_call.1} parent=51 // pred_region
          %s345 = sand.u32 %s145, 1
          %s346 = scalar_lea.sflag [#allocation4], %s345
          %s347 = sand.u32 %s145, 1
          %s348 = smul.addr %s347, 8
          %s349 = scalar_lea.vmem [#allocation7], %s348
          %350 = dma.done %s346, 128
        $region56: #{tpu_custom_call.1} parent=51 // pred_fallthru
          _
      $region52: #{tpu_custom_call.1} parent=5 // pred_fallthru
        _
    $region6: #{tpu_custom_call.1} parent=1 // loop_footer
      %s23 = sadd.s32 1, %s19
    $region7: #{tpu_custom_call.1} parent=1 // loop_footer_branch
      %18 = sbr.rel target = $region3
    $region8: #{tpu_custom_call.1} parent=1 // loop_exit
      _
    %351 = vsyncpa [#allocation3], 1
    %s352 = scalar_lea.sflag [#allocation3], 1
    %353 = vsyncpa %s352, 1
    %354 = vsyncpa [#allocation6], 1
    %s355 = scalar_lea.sflag [#allocation6], 1
    %356 = vsyncpa %s355, 1
    %357 = vsyncpa [#allocation4], 1
    %s358 = scalar_lea.sflag [#allocation4], 1
    %359 = vsyncpa %s358, 1

</llo_original>
